<compile_context>
chip_gen: v5e
topology: v5e:2x2
jax: 0.10.0
libtpu: 0.0.40
codegen_flags: <defaults>
</compile_context>

<pallas_src>
import jax
import jax.numpy as jnp
from jax.experimental import pallas as pl
from jax.experimental.pallas import tpu as pltpu


def _conv1x1_kernel(w_ref, x_ref, b_ref, o_ref):
    # w_ref: (C_out, C_in)  x_ref: (C_in, T)  b_ref: (C_out, 1)  o_ref: (C_out, T)
    acc = jnp.dot(w_ref[...], x_ref[...], preferred_element_type=jnp.float32)
    o_ref[...] = (acc + b_ref[...]).astype(o_ref.dtype)


def _round_down_128(v):
    return max(128, (v // 128) * 128)


def _choose_tile(length, c_in, c_out, outer_steps, *,
                 target_step_bytes=2 << 20, min_step_bytes=512 << 10):
    """Lane-axis tile: ~1-4 MiB per grid step, multiple of 128 (or full axis),
    shrunk only to keep >=4 total grid steps (v7x megacore) when each step
    still moves >= min_step_bytes."""
    if length <= 128:
        return length
    per_lane = (c_in + c_out) * 4          # f32 bytes moved per lane column (in + out)
    tl = _round_down_128(target_step_bytes // max(per_lane, 1))
    tl = min(tl, -(-length // 128) * 128)  # no bigger than needed to cover the axis
    while (outer_steps * (-(-length // tl)) < 4 and tl > 128
           and (tl // 2) * per_lane >= min_step_bytes):
        tl = _round_down_128(tl // 2)
    return tl


def _conv1x1_native(x_ncl, weight, bias, *, tile_override=None):
    """Tile the native (N, C_in, L) / (N, C_out, L) layout directly."""
    N, C_in, L = x_ncl.shape
    C_out = weight.shape[0]
    tl = tile_override if tile_override is not None else _choose_tile(L, C_in, C_out, N)
    n_l = pl.cdiv(L, tl)
    b2d = bias.reshape(C_out, 1)

    step_bytes = (C_in + C_out) * tl * 4
    vmem_limit = int(min(32 << 20, max(8 << 20, 3 * step_bytes)))
    cost = pl.CostEstimate(
        flops=2 * N * L * C_in * C_out,
        transcendentals=0,
        bytes_accessed=4 * (N * C_in * L + N * C_out * L + C_out * C_in + C_out),
    )

    return pl.pallas_call(
        _conv1x1_kernel,
        out_shape=jax.ShapeDtypeStruct((N, C_out, L), x_ncl.dtype),
        grid_spec=pltpu.PrefetchScalarGridSpec(
            num_scalar_prefetch=0,
            grid=(N, n_l),
            in_specs=[
                pl.BlockSpec((C_out, C_in), lambda n, l: (0, 0)),      # weight (invariant)
                pl.BlockSpec((None, C_in, tl), lambda n, l: (n, 0, l)),  # x tile (batch squeezed)
                pl.BlockSpec((C_out, 1), lambda n, l: (0, 0)),         # bias (invariant)
            ],
            out_specs=pl.BlockSpec((None, C_out, tl), lambda n, l: (n, 0, l)),
        ),
        compiler_params=pltpu.CompilerParams(
            dimension_semantics=("parallel", "parallel"),
            vmem_limit_bytes=vmem_limit,
        ),
        cost_estimate=cost,
    )(weight, x_ncl, b2d)


def _conv1x1_flat(x_ncl, weight, bias, *, tile_override=None):
    """Fallback for tiny L: flatten to (C_in, N*L) so output stores are lane-dense."""
    N, C_in, L = x_ncl.shape
    C_out = weight.shape[0]
    M = N * L
    # (N, C_in, L) -> (C_in, N*L): channels on sublanes, flattened positions on lanes.
    x_cm = jnp.transpose(x_ncl, (1, 0, 2)).reshape(C_in, M)
    tm = tile_override if tile_override is not None else _choose_tile(M, C_in, C_out, 1)
    b2d = bias.reshape(C_out, 1)

    out_cm = pl.pallas_call(
        _conv1x1_kernel,
        out_shape=jax.ShapeDtypeStruct((C_out, M), x_ncl.dtype),
        grid_spec=pltpu.PrefetchScalarGridSpec(
            num_scalar_prefetch=0,
            grid=(pl.cdiv(M, tm),),
            in_specs=[
                pl.BlockSpec((C_out, C_in), lambda i: (0, 0)),
                pl.BlockSpec((C_in, tm), lambda i: (0, i)),
                pl.BlockSpec((C_out, 1), lambda i: (0, 0)),
            ],
            out_specs=pl.BlockSpec((C_out, tm), lambda i: (0, i)),
        ),
        compiler_params=pltpu.CompilerParams(
            dimension_semantics=("parallel",),
        ),
    )(weight, x_cm, b2d)
    # (C_out, N*L) -> (N, C_out, L): cheap at tiny sizes (this path only runs for L < 128).
    return jnp.transpose(out_cm.reshape(C_out, N, L), (1, 0, 2))


def conv1d_k1(x_ncl, weight, bias, *, tile_override=None):
    """Conv1d with kernel size 1.

    x_ncl:  (N, C_in, L)   float32
    weight: (C_out, C_in)  float32  (PyTorch weight squeezed over kernel dim)
    bias:   (C_out,)       float32
    returns (N, C_out, L)  float32
    """
    L = x_ncl.shape[2]
    if L >= 128:
        return _conv1x1_native(x_ncl, weight, bias, tile_override=tile_override)
    return _conv1x1_flat(x_ncl, weight, bias, tile_override=tile_override)


def conv1d_k1_neg_cat(x_ncl, weight, bias, *, tile_override=None):
    """Equivalent of conv1d_k1(cat([x, -x], dim=1), weight, bias) with the
    channel concatenation folded into the weight (halves HBM traffic)."""
    C = x_ncl.shape[1]
    assert weight.shape[1] == 2 * C, "weight expects cat([x, -x], dim=1) channels"
    w_eff = weight[:, :C] - weight[:, C:]
    return conv1d_k1(x_ncl, w_eff, bias, tile_override=tile_override)


class TestPallas:
    """JAX/Pallas port of the PyTorch `Test` module (Conv1d, kernel_size=1)."""

    def __init__(self, in_channel, out_channel):
        self.in_channel = in_channel
        self.out_channel = out_channel
        # Module zero-initializes both weight and bias deterministically.
        self.weight = jnp.zeros((out_channel, in_channel), dtype=jnp.float32)
        self.bias = jnp.zeros((out_channel,), dtype=jnp.float32)

    def __call__(self, x_ncl):
        # Direct module forward: x already has `in_channel` channels.
        return conv1d_k1(x_ncl, self.weight, self.bias)

    def forward_neg_cat(self, x_ncl):
        # Fused top-level preprocessing: conv(cat([x, -x], dim=1)) without
        # materializing the concatenated tensor.
        return conv1d_k1_neg_cat(x_ncl, self.weight, self.bias)


if __name__ == "__main__":
    key = jax.random.PRNGKey(0)

    # Small shapes: batch=2, channels=4, length=16 (flat fallback path).
    N, C, L = 2, 4, 16
    x = jax.random.normal(key, (N, C, L), dtype=jnp.float32)

    in_channel = 2 * C
    out_channel = 8
    model = TestPallas(in_channel, out_channel)

    # Primary path: preprocessing folded into the weight; zero params => zeros.
    y = jax.block_until_ready(model.forward_neg_cat(x))
    assert y.shape == (N, out_channel, L), y.shape
    assert bool(jnp.all(y == 0.0))

    # Sanity-check kernel math with nonzero params against plain JAX.
    k1, k2 = jax.random.split(key)
    w = jax.random.normal(k1, (out_channel, in_channel), dtype=jnp.float32)
    b = jax.random.normal(k2, (out_channel,), dtype=jnp.float32)

    x_cat = jnp.concatenate([x, -x], axis=1)  # reference-only materialization
    ref = jnp.einsum("ncl,oc->nol", x_cat, w) + b[None, :, None]
    y_direct = jax.block_until_ready(conv1d_k1(x_cat, w, b))
    y_fused = jax.block_until_ready(conv1d_k1_neg_cat(x, w, b))
    assert jnp.allclose(y_direct, ref, atol=1e-5, rtol=1e-5)
    assert jnp.allclose(y_fused, ref, atol=1e-5, rtol=1e-5)

    # Native-layout path (L >= 128), single tile per batch element.
    L2 = 256
    x2 = jax.random.normal(k2, (N, C, L2), dtype=jnp.float32)
    x2_cat = jnp.concatenate([x2, -x2], axis=1)
    ref2 = jnp.einsum("ncl,oc->nol", x2_cat, w) + b[None, :, None]
    y2 = jax.block_until_ready(conv1d_k1_neg_cat(x2, w, b))
    assert jnp.allclose(y2, ref2, atol=1e-4, rtol=1e-5)

    # Native-layout path with a multi-step grid and a ragged tail tile
    # (L=320, tile=128 -> 3 L-tiles, last one partially out of bounds).
    L3 = 320
    x3 = jax.random.normal(k1, (N, C, L3), dtype=jnp.float32)
    x3_cat = jnp.concatenate([x3, -x3], axis=1)
    ref3 = jnp.einsum("ncl,oc->nol", x3_cat, w) + b[None, :, None]
    y3 = jax.block_until_ready(conv1d_k1_neg_cat(x3, w, b, tile_override=128))
    assert jnp.allclose(y3, ref3, atol=1e-4, rtol=1e-5)

    print("KERNEL_OK")
</pallas_src>

<mosaic_0001>
module attributes {stable_mosaic.version = 11 : i64} {
  func.func @_conv1x1_kernel(%arg0: i32, %arg1: memref<8x4xf32, #tpu.memory_space<vmem>>, %arg2: memref<4x32xf32, #tpu.memory_space<vmem>>, %arg3: memref<8x1xf32, #tpu.memory_space<vmem>>, %arg4: memref<8x32xf32, #tpu.memory_space<vmem>>) attributes {dimension_semantics = [#tpu.dimension_semantics<parallel>], iteration_bounds = array<i64: 1>, scalar_prefetch = 0 : i64, scratch_operands = 0 : i64, tpu.core_type = #tpu.core_type<tc>, window_params = [{pipeline_mode = #tpu.pipeline_mode<synchronous>, transform_indices = @transform_0, window_bounds = array<i64: 8, 4>}, {transform_indices = @transform_1, window_bounds = array<i64: 4, 32>}, {pipeline_mode = #tpu.pipeline_mode<synchronous>, transform_indices = @transform_2, window_bounds = array<i64: 8, 1>}, {transform_indices = @transform_3, window_bounds = array<i64: 8, 32>}]} {
    %c0 = arith.constant 0 : index
    %c0_0 = arith.constant 0 : index
    %0 = vector.load %arg1[%c0, %c0_0] : memref<8x4xf32, #tpu.memory_space<vmem>>, vector<8x4xf32>
    %c0_1 = arith.constant 0 : index
    %c0_2 = arith.constant 0 : index
    %1 = vector.load %arg2[%c0_1, %c0_2] : memref<4x32xf32, #tpu.memory_space<vmem>>, vector<4x32xf32>
    %cst = arith.constant dense<0.000000e+00> : vector<8x32xf32>
    %2 = tpu.matmul %0, %1, %cst {dimension_numbers = #tpu.dot_dimension_numbers<[1], [0], [0], [1], [0, 0, 1, 1], [], []>} : vector<8x4xf32>, vector<4x32xf32>, vector<8x32xf32> -> vector<8x32xf32>
    %c0_3 = arith.constant 0 : index
    %c0_4 = arith.constant 0 : index
    %3 = vector.load %arg3[%c0_3, %c0_4] : memref<8x1xf32, #tpu.memory_space<vmem>>, vector<8x1xf32>
    %4 = vector.broadcast %3 : vector<8x1xf32> to vector<8x32xf32>
    %5 = arith.addf %2, %4 : vector<8x32xf32>
    %c0_5 = arith.constant 0 : index
    %c0_6 = arith.constant 0 : index
    %6 = vector.load %arg4[%c0_5, %c0_6] : memref<8x32xf32, #tpu.memory_space<vmem>>, vector<8x32xf32>
    tpu.vector_store %arg4[%c0_5, %c0_6], %5 {strides = array<i32>} : memref<8x32xf32, #tpu.memory_space<vmem>>, vector<8x32xf32>,
    return
  }
  func.func @transform_0(%arg0: i32) -> (i32, i32) {
    %c0_i32 = arith.constant 0 : i32
    %c0_i32_0 = arith.constant 0 : i32
    %c0_i32_1 = arith.constant 0 : i32
    return %c0_i32, %c0_i32_0 : i32, i32
  }
  func.func @transform_1(%arg0: i32) -> (i32, i32) {
    %c0_i32 = arith.constant 0 : i32
    %c0_i32_0 = arith.constant 0 : i32
    return %c0_i32, %arg0 : i32, i32
  }
  func.func @transform_2(%arg0: i32) -> (i32, i32) {
    %c0_i32 = arith.constant 0 : i32
    %c0_i32_0 = arith.constant 0 : i32
    %c0_i32_1 = arith.constant 0 : i32
    return %c0_i32, %c0_i32_0 : i32, i32
  }
  func.func @transform_3(%arg0: i32) -> (i32, i32) {
    %c0_i32 = arith.constant 0 : i32
    %c0_i32_0 = arith.constant 0 : i32
    return %c0_i32, %arg0 : i32, i32
  }
}

</mosaic_0001>

<llo_original>
// kernel: tpu_custom_call.1
$region0: #{tpu_custom_call.1}
  #allocation0 [shape = 'u32[]', space=smem, size = 0x4, offset = 0x4, fixed_abs, tag = 'smem constant byte address 0x4 - core index']
  #allocation1 [shape = 'u32[72,128]{1,0:T(1,128)}', space=vmem, size = 0x9000, scoped, tag = 'internal scratch']
  %s0 = inlined_call_operand.vmem [shape: f32[8,4], index: 0, kind: input, shape index: {}]
  %s1 = inlined_call_operand.vmem [shape: f32[4,32], index: 1, kind: input, shape index: {}]
  %s2 = inlined_call_operand.vmem [shape: f32[8,1], index: 2, kind: input, shape index: {}]
  %s3 = inlined_call_operand.hbm [shape: f32[8,32], index: 3, kind: output, shape index: {}]
  %s4 = sld [smem:[#allocation0]]
  $region22: #{tpu_custom_call.1} parent=0
    _
  %s6 = ssub.s32 1, %s4
  %s7 = scalar_select 0, %s6, %s4
  $region1: #{tpu_custom_call.1} parent=0
    #allocation2 [shape = 'u8[4096]{0}', space=vmem, size = 0x1000, scoped, tag = 'output window, operand 0, single buffered']
    #allocation3 [shape = 's32[1]{0}', space=sflag, size = 0x4, scoped, tag = 'scoped memory for tpu_custom_call.1']
    %8 = vsyncpa [#allocation3], 0
    // Predicated region
    $region2: #{tpu_custom_call.1} parent=1 // pred_check
      _
    $region3: #{tpu_custom_call.1} parent=1 // pred_check_branch
      %10 = sbr.rel (0) target = $region5
    $region4: #{tpu_custom_call.1} parent=1 // pred_region
      _
    $region5: #{tpu_custom_call.1} parent=1 // pred_fallthru
      _
    // Predicated region
    $region6: #{tpu_custom_call.1} parent=1 // pred_check
      _
    $region7: #{tpu_custom_call.1} parent=1 // pred_check_branch
      %12 = sbr.rel (0) target = $region9
    $region8: #{tpu_custom_call.1} parent=1 // pred_region
      _
    $region9: #{tpu_custom_call.1} parent=1 // pred_fallthru
      _
    // Predicated region
    $region10: #{tpu_custom_call.1} parent=1 // pred_check
      _
    $region11: #{tpu_custom_call.1} parent=1 // pred_check_branch
      %14 = sbr.rel (0) target = $region13
    $region12: #{tpu_custom_call.1} parent=1 // pred_region
      _
    $region13: #{tpu_custom_call.1} parent=1 // pred_fallthru
      _
    %v15 = vld [vmem:[%s0] sm:$0xff]
    %v16 = vld [vmem:[%s1] sm:$0xf]
    %v17 = vld [vmem:[%s2] sm:$0xff]
    %19 = vset.pattern.permute.xlu0 0
    %20 = vperm.xlu0 %19, %v17
    %v21 = vpop.permute.xlu0 %20
    %vm23 = vcmask 31744
    %v25 = vsel %vm23, %v15, 0
    %vm27 = vcmask 1043456
    %v29 = vsel %vm27, %v16, 0
    %31 = vmatpush.msra.mxu0 0.0
    %32 = vmatpush.msra.mxu0 0.0
    %33 = vmatpush.msra.mxu0 0.0
    %34 = vmatpush.msra.mxu0 0.0
    %35 = vmatpush.msra.mxu0 0.0
    %36 = vmatpush.msra.mxu0 0.0
    %37 = vmatpush.msra.mxu0 0.0
    %38 = vmatpush.msra.mxu0 0.0
    %39 = vmatpush.msra.mxu0 0.0
    %40 = vmatpush.msra.mxu0 0.0
    %41 = vmatpush.msra.mxu0 0.0
    %42 = vmatpush.msra.mxu0 0.0
    %43 = vmatpush.msra.mxu0 0.0
    %44 = vmatpush.msra.mxu0 0.0
    %45 = vmatpush.msra.mxu0 0.0
    %46 = vmatpush.msra.mxu0 %v29
    %47 = vmatmul.f32.gmra.mxu0 %v25
    %v48 = vpop.f32.mrf.mxu0
    %v49 = vadd.f32 %v21, %v48
    %50 = vdwg.mxu0
    %vm51 = vcmask 261120
    %52 = vst.msk [vmem:[#allocation2] sm:$0xff] %vm51, %v49
    // Predicated region
    $region14: #{tpu_custom_call.1} parent=1 // pred_check
      _
    $region15: #{tpu_custom_call.1} parent=1 // pred_check_branch
      %54 = sbr.rel (0) target = $region17
    $region16: #{tpu_custom_call.1} parent=1 // pred_region
      %56 = vsyncadd [#allocation3], 0
      %s58 = sshll.u32 [#allocation2], 4
      %s59 = int_to_ptr.vmem [resolvable:$true] %s58
      %s60 = sshll.u32 %s3, 4
      %s61 = int_to_ptr.hbm [resolvable:$true] %s60
      %63 = dma.vmem_to_hbm [thread:$0]  %s59, 128, %s61, [#allocation3]
    $region17: #{tpu_custom_call.1} parent=1 // pred_fallthru
      _
    // Predicated region
    $region18: #{tpu_custom_call.1} parent=1 // pred_check
      _
    $region19: #{tpu_custom_call.1} parent=1 // pred_check_branch
      %65 = sbr.rel (0) target = $region21
    $region20: #{tpu_custom_call.1} parent=1 // pred_region
      %67 = dma.done [#allocation3], 128
    $region21: #{tpu_custom_call.1} parent=1 // pred_fallthru
      _
    %68 = vsyncpa [#allocation3], 1

</llo_original>
